<compile_context>
chip_gen: v6e
topology: v6e:2x2x1
jax: 0.10.0
libtpu: 0.0.40
codegen_flags: <defaults>
</compile_context>

<pallas_src>
import functools

import jax
import jax.numpy as jnp
import numpy as np
from jax.experimental import pallas as pl
from jax.experimental.pallas import tpu as pltpu

SELU_ALPHA = 1.6732632423543772
SELU_SCALE = 1.0507009873554805
LN_EPS = 1e-5
_VMEM_LIMIT = 48 * 1024 * 1024   # < v7x 64 MiB physical, > v5e 16 MiB scoped default


def _round_up(x, m):
    return ((x + m - 1) // m) * m


def _selu(x):
    # expm1(min(x,0)) avoids overflow in the untaken branch of where()
    return SELU_SCALE * jnp.where(x > 0, x, SELU_ALPHA * jnp.expm1(jnp.minimum(x, 0.0)))


# ---------------------------------------------------------------------------
# Kernel 1: edgeScalarToNodeVector  (tiny batched matmul as unrolled VPU MACs),
# tiled over V2 rows.
#   inv_ref : [T, 2*k2]   (component c, neighbour k)   row-major
#   ea_ref  : [T, k2*F2]  (neighbour k, feature f)     row-major
#   v_ref   : [T, 2*F2]   output, columns = [vx | vy]
# ---------------------------------------------------------------------------
def _node_vector_kernel(inv_ref, ea_ref, v_ref, *, k2, f2):
    inv = inv_ref[...].astype(jnp.float32)
    ea = ea_ref[...].astype(jnp.float32)
    vx = jnp.zeros((inv.shape[0], f2), jnp.float32)
    vy = jnp.zeros((inv.shape[0], f2), jnp.float32)
    for k in range(k2):  # k2 is small & static -> fully unrolled
        ea_k = ea[:, k * f2:(k + 1) * f2]
        vx = vx + inv[:, k:k + 1] * ea_k            # component c = 0
        vy = vy + inv[:, k2 + k:k2 + k + 1] * ea_k  # component c = 1
    v_ref[:, :f2] = vx        # column-view stores: no lane-shuffle concat
    v_ref[:, f2:] = vy


def edge_scalar_to_node_vector(edge_attr2, edge_unit_vec_inv2, *, tile=2048,
                               input_dtype=jnp.float32):
    V2, _, k2 = edge_unit_vec_inv2.shape
    F2 = edge_attr2.shape[1]
    inv_flat = edge_unit_vec_inv2.reshape(V2, 2 * k2).astype(input_dtype)
    ea_flat = edge_attr2.reshape(V2, k2 * F2).astype(input_dtype)

    min_rows = 8 if input_dtype == jnp.float32 else 16
    tile_v = max(min_rows, min(tile, _round_up(pl.cdiv(V2, 4), min_rows)))
    V2p = _round_up(V2, tile_v)
    if V2p != V2:
        inv_flat = jnp.pad(inv_flat, ((0, V2p - V2), (0, 0)))
        ea_flat = jnp.pad(ea_flat, ((0, V2p - V2), (0, 0)))

    out = pl.pallas_call(
        functools.partial(_node_vector_kernel, k2=k2, f2=F2),
        out_shape=jax.ShapeDtypeStruct((V2p, 2 * F2), jnp.float32),
        grid=(V2p // tile_v,),
        in_specs=[pl.BlockSpec((tile_v, 2 * k2), lambda i: (i, 0)),
                  pl.BlockSpec((tile_v, k2 * F2), lambda i: (i, 0))],
        out_specs=pl.BlockSpec((tile_v, 2 * F2), lambda i: (i, 0)),
        compiler_params=pltpu.CompilerParams(
            dimension_semantics=("parallel",), vmem_limit_bytes=_VMEM_LIMIT),
    )(inv_flat, ea_flat)
    return out[:V2]


# ---------------------------------------------------------------------------
# Kernel 2: per-edge projection + 3-layer SELU MLP + LayerNorm (hot path),
# feature-major (transposed) layout so every VMEM block / store is lane-dense.
#   x_ref   : [W, tile_e]  rows = [ v1x (f2) | v1y (f2) | ux | uy | edge_attr1 (f1) ]
#   out_ref : [Fo, tile_e]
#   weights pre-transposed: w1e [H,f2], w1a [H,f1], w2 [H,H], w3 [Fo,H];
#   biases / gamma / beta are column vectors (broadcast along lanes).
# First layer stays split (two dots) to avoid a sublane-unaligned concat.
# ---------------------------------------------------------------------------
def _up_edge_mlp_kernel(x_ref, w1e_ref, w1a_ref, b1_ref, w2_ref, b2_ref,
                        w3_ref, b3_ref, g_ref, beta_ref, out_ref, *,
                        f2, f1, sub, mxu_dtype):
    del f1  # implied by slicing below
    w1e = w1e_ref[...].astype(mxu_dtype)
    w1a = w1a_ref[...].astype(mxu_dtype)
    w2 = w2_ref[...].astype(mxu_dtype)
    w3 = w3_ref[...].astype(mxu_dtype)
    b1, b2, b3 = b1_ref[...], b2_ref[...], b3_ref[...]
    g, beta = g_ref[...], beta_ref[...]

    n_sub = x_ref.shape[1] // sub
    for s in range(n_sub):                       # static unroll; slices are aligned views
        x = x_ref[:, s * sub:(s + 1) * sub].astype(jnp.float32)   # math stays f32
        vx = x[:f2, :]
        vy = x[f2:2 * f2, :]
        ux = x[2 * f2:2 * f2 + 1, :]
        uy = x[2 * f2 + 1:2 * f2 + 2, :]
        ea1 = x[2 * f2 + 2:, :]

        e1 = vx * ux + vy * uy                   # [f2, sub] projection on edge unit vector
        h = (jnp.dot(w1e, e1.astype(mxu_dtype), preferred_element_type=jnp.float32)
             + jnp.dot(w1a, ea1.astype(mxu_dtype), preferred_element_type=jnp.float32) + b1)
        h = _selu(h)
        h = _selu(jnp.dot(w2, h.astype(mxu_dtype), preferred_element_type=jnp.float32) + b2)
        h = jnp.dot(w3, h.astype(mxu_dtype), preferred_element_type=jnp.float32) + b3  # [Fo,sub]
        mu = jnp.mean(h, axis=0, keepdims=True)
        var = jnp.mean((h - mu) ** 2, axis=0, keepdims=True)
        out_ref[:, s * sub:(s + 1) * sub] = (h - mu) * jax.lax.rsqrt(var + LN_EPS) * g + beta


def up_edge_mlp(packed_t, params, *, f2, f1, tile=8192, sub_tile=1024,
                input_dtype=jnp.bfloat16, mxu_dtype=jnp.bfloat16):
    """packed_t: [W, E1] feature-major packed per-edge input,
       rows = [ v1x[col1] (f2) | v1y[col1] (f2) | edgeUnitVector1 (2) | edge_attr1 (f1) ].
       Returns [E1, Fo] (module layout)."""
    (w1, b1), (w2, b2), (w3, b3), (gamma, beta) = params
    W, E1 = packed_t.shape
    assert W == 2 * f2 + 2 + f1
    Fo = w3.shape[1]

    w1 = w1.astype(jnp.float32)
    consts = (w1[:f2].T, w1[f2:].T, b1.reshape(-1, 1),       # split first-layer weights
              w2.T, b2.reshape(-1, 1),
              w3.T, b3.reshape(-1, 1),
              gamma.reshape(-1, 1), beta.reshape(-1, 1))
    consts = tuple(jnp.asarray(c, jnp.float32) for c in consts)

    # Big lane tiles amortize the ~0.35us per-grid-step overhead; the clamp keeps >=4
    # grid steps at production sizes (v7x megacore double-buffering), >=2 at tiny ones.
    tile_e = max(128, min(tile, _round_up(pl.cdiv(E1, 4), 128)))
    sub = max(128, min(_round_up(sub_tile, 128), tile_e))
    tile_e = _round_up(tile_e, sub)
    E1p = _round_up(E1, tile_e)

    packed_t = packed_t.astype(input_dtype)
    if E1p != E1:
        packed_t = jnp.pad(packed_t, ((0, 0), (0, E1p - E1)))

    out_t = pl.pallas_call(
        functools.partial(_up_edge_mlp_kernel, f2=f2, f1=f1, sub=sub, mxu_dtype=mxu_dtype),
        out_shape=jax.ShapeDtypeStruct((Fo, E1p), jnp.float32),
        grid=(E1p // tile_e,),
        in_specs=[pl.BlockSpec((W, tile_e), lambda i: (0, i))]
                 + [pl.BlockSpec(c.shape, lambda i: (0, 0)) for c in consts],
        out_specs=pl.BlockSpec((Fo, tile_e), lambda i: (0, i)),
        compiler_params=pltpu.CompilerParams(
            dimension_semantics=("parallel",), vmem_limit_bytes=_VMEM_LIMIT),
    )(packed_t, *consts)
    return out_t[:, :E1].T     # back to the module's [E1, Fo] layout


# ---------------------------------------------------------------------------
# Full UpEdgeMP forward (glue in plain JAX, hot paths in the kernels above)
# ---------------------------------------------------------------------------
def up_edge_mp_forward(params, pos, y_idx_21, x_idx_21, weights_21,
                       edge_attr2, edge_index2, edgeUnitVectorInverse2, coarse_mask2,
                       edge_attr1, edge_index1, edgeUnitVector1, coarse_mask1=None,
                       *, tile=8192, sub_tile=1024,
                       input_dtype=jnp.bfloat16, mxu_dtype=jnp.bfloat16):
    N1 = pos.shape[0]
    F2 = edge_attr2.shape[1]
    F1 = edge_attr1.shape[1]

    # --- step 1: low-res projection-aggregation (Pallas kernel, tiled over V2) ---
    v2 = edge_scalar_to_node_vector(edge_attr2, edgeUnitVectorInverse2)   # [V2, 2*F2] = [vx|vy]

    # --- step 2: knn_interpolate (data-dependent scatter-add -> plain XLA) ---
    # TODO(synk): data-dependent scatter/gather has no clean static-BlockSpec Pallas form.
    w = weights_21.astype(jnp.float32)
    if coarse_mask1 is None:
        num = jnp.zeros((N1, 2 * F2), jnp.float32).at[y_idx_21].add(v2[x_idx_21] * w)
        den = jnp.zeros((N1, 1), jnp.float32).at[y_idx_21].add(w)
        v1 = num / den      # PyG guarantees >=1 interpolation entry per target node
    else:
        # coarse_mask1 must be a concrete (host) boolean mask, as in torch bool indexing.
        idx = np.flatnonzero(np.asarray(coarse_mask1))
        n_tgt = int(idx.shape[0])
        num = jnp.zeros((n_tgt, 2 * F2), jnp.float32).at[y_idx_21].add(v2[x_idx_21] * w)
        den = jnp.zeros((n_tgt, 1), jnp.float32).at[y_idx_21].add(w)
        v1 = jnp.zeros((N1, 2 * F2), jnp.float32).at[jnp.asarray(idx)].set(num / den)

    # --- step 3: gather + feature-major pack (XLA fusion), fused proj/MLP/LN kernel ---
    col1 = edge_index1[1]
    packed_t = jnp.concatenate([v1[col1].T,                                  # [2*F2, E1]
                                edgeUnitVector1.astype(jnp.float32).T,       # [2,   E1]
                                edge_attr1.astype(jnp.float32).T], axis=0)   # [F1,  E1]
    return up_edge_mlp(packed_t, params, f2=F2, f1=F1, tile=tile, sub_tile=sub_tile,
                       input_dtype=input_dtype, mxu_dtype=mxu_dtype)


# ---------------------------------------------------------------------------
# Pure-JAX reference (mirrors the PyTorch code line by line) for validation
# ---------------------------------------------------------------------------
def reference_forward(params, pos, y_idx_21, x_idx_21, weights_21,
                      edge_attr2, edge_index2, edgeUnitVectorInverse2, coarse_mask2,
                      edge_attr1, edge_index1, edgeUnitVector1):
    (w1, b1), (w2, b2), (w3, b3), (gamma, beta) = params
    N1 = pos.shape[0]
    V2, _, k2 = edgeUnitVectorInverse2.shape
    F2 = edge_attr2.shape[1]
    v = jnp.einsum('nck,nkf->ncf', edgeUnitVectorInverse2, edge_attr2.reshape(V2, k2, F2))
    v2 = jnp.transpose(v, (0, 2, 1)).reshape(V2, 2 * F2)
    num = jnp.zeros((N1, 2 * F2)).at[y_idx_21].add(v2[x_idx_21] * weights_21)
    den = jnp.zeros((N1, 1)).at[y_idx_21].add(weights_21)
    v1 = num / den
    col1 = edge_index1[1]
    E1 = col1.shape[0]
    e1 = (v1[col1].reshape(E1, F2, 2) * edgeUnitVector1[:, None, :]).sum(-1)
    x = jnp.concatenate([e1, edge_attr1], axis=1)
    h = _selu(x @ w1 + b1)
    h = _selu(h @ w2 + b2)
    h = h @ w3 + b3
    mu = jnp.mean(h, -1, keepdims=True)
    var = jnp.mean((h - mu) ** 2, -1, keepdims=True)
    return (h - mu) / jnp.sqrt(var + LN_EPS) * gamma + beta


if __name__ == "__main__":
    key = jax.random.PRNGKey(0)
    ks = jax.random.split(key, 16)

    # ---- small synthetic problem ----
    N1, V2, k2, F2 = 64, 16, 4, 4          # high-res nodes, low-res nodes, in-degree, low-res feat
    E2 = V2 * k2
    E1, F1 = 256, 4                        # high-res edges / features
    k_interp = 3
    M = N1 * k_interp
    HID, FO = 32, 4                        # up_mlp_args = (F2 + F1, (32, 32, 4), layer_norm=True)

    pos = jax.random.normal(ks[0], (N1, 2), jnp.float32)
    edge_attr2 = jax.random.normal(ks[1], (E2, F2), jnp.float32)
    edge_index2 = jnp.stack([jax.random.randint(ks[2], (E2,), 0, V2),
                             jnp.repeat(jnp.arange(V2), k2)]).astype(jnp.int32)
    edgeUnitVectorInverse2 = jax.random.normal(ks[3], (V2, 2, k2), jnp.float32)
    coarse_mask2 = jnp.ones((V2,), jnp.bool_)

    y_idx_21 = jnp.repeat(jnp.arange(N1, dtype=jnp.int32), k_interp)      # [M]
    x_idx_21 = jax.random.randint(ks[4], (M,), 0, V2).astype(jnp.int32)   # [M]
    weights_21 = jax.random.uniform(ks[5], (M, 1), jnp.float32) + 0.1     # [M, 1]

    edge_attr1 = jax.random.normal(ks[6], (E1, F1), jnp.float32)
    edge_index1 = jax.random.randint(ks[7], (2, E1), 0, N1).astype(jnp.int32)
    uv = jax.random.normal(ks[8], (E1, 2), jnp.float32)
    edgeUnitVector1 = uv / jnp.linalg.norm(uv, axis=1, keepdims=True)

    # ---- deterministic MLP parameters (input = F2 + F1, widths (32, 32, 4), LayerNorm) ----
    w1 = 0.1 * jax.random.normal(ks[9], (F2 + F1, HID), jnp.float32)
    b1 = 0.1 * jax.random.normal(ks[10], (1, HID), jnp.float32)
    w2 = 0.1 * jax.random.normal(ks[11], (HID, HID), jnp.float32)
    b2 = 0.1 * jax.random.normal(ks[12], (1, HID), jnp.float32)
    w3 = 0.1 * jax.random.normal(ks[13], (HID, FO), jnp.float32)
    b3 = 0.1 * jax.random.normal(ks[14], (1, FO), jnp.float32)
    gamma = jnp.ones((1, FO), jnp.float32)
    beta = jnp.zeros((1, FO), jnp.float32)
    params = ((w1, b1), (w2, b2), (w3, b3), (gamma, beta))

    ref = reference_forward(params, pos, y_idx_21, x_idx_21, weights_21,
                            edge_attr2, edge_index2, edgeUnitVectorInverse2, coarse_mask2,
                            edge_attr1, edge_index1, edgeUnitVector1)
    ref = jax.block_until_ready(ref)

    # --- f32 path: exact check against the pure-JAX reference ---
    out = up_edge_mp_forward(params, pos, y_idx_21, x_idx_21, weights_21,
                             edge_attr2, edge_index2, edgeUnitVectorInverse2, coarse_mask2,
                             edge_attr1, edge_index1, edgeUnitVector1, coarse_mask1=None,
                             input_dtype=jnp.float32, mxu_dtype=jnp.float32)
    out = jax.block_until_ready(out)
    assert out.shape == (E1, FO)
    np.testing.assert_allclose(np.asarray(out), np.asarray(ref), rtol=1e-4, atol=1e-4)

    # --- default path: bf16 packed input + bf16 MXU operands (f32 accumulation) ---
    out_bf16 = up_edge_mp_forward(params, pos, y_idx_21, x_idx_21, weights_21,
                                  edge_attr2, edge_index2, edgeUnitVectorInverse2, coarse_mask2,
                                  edge_attr1, edge_index1, edgeUnitVector1, coarse_mask1=None)
    out_bf16 = jax.block_until_ready(out_bf16)
    assert out_bf16.shape == (E1, FO)
    assert bool(jnp.all(jnp.isfinite(out_bf16)))
    diff = np.abs(np.asarray(out_bf16) - np.asarray(ref))
    assert float(diff.mean()) < 0.1, f"bf16 path mean |err| too large: {float(diff.mean()):.4f}"

    print("KERNEL_OK")
</pallas_src>

<mosaic_0001>
module attributes {stable_mosaic.version = 11 : i64} {
  func.func @_node_vector_kernel(%arg0: i32, %arg1: memref<8x8xf32, #tpu.memory_space<vmem>>, %arg2: memref<8x16xf32, #tpu.memory_space<vmem>>, %arg3: memref<8x8xf32, #tpu.memory_space<vmem>>) attributes {dimension_semantics = [#tpu.dimension_semantics<parallel>], iteration_bounds = array<i64: 2>, scalar_prefetch = 0 : i64, scratch_operands = 0 : i64, tpu.core_type = #tpu.core_type<tc>, window_params = [{transform_indices = @transform_0, window_bounds = array<i64: 8, 8>}, {transform_indices = @transform_1, window_bounds = array<i64: 8, 16>}, {transform_indices = @transform_2, window_bounds = array<i64: 8, 8>}]} {
    %c0 = arith.constant 0 : index
    %c0_0 = arith.constant 0 : index
    %0 = vector.load %arg1[%c0, %c0_0] : memref<8x8xf32, #tpu.memory_space<vmem>>, vector<8x8xf32>
    %c0_1 = arith.constant 0 : index
    %c0_2 = arith.constant 0 : index
    %1 = vector.load %arg2[%c0_1, %c0_2] : memref<8x16xf32, #tpu.memory_space<vmem>>, vector<8x16xf32>
    %cst = arith.constant 0.000000e+00 : f32
    %2 = vector.broadcast %cst : f32 to vector<8x4xf32>
    %cst_3 = arith.constant 0.000000e+00 : f32
    %3 = vector.broadcast %cst_3 : f32 to vector<8x4xf32>
    %4 = vector.extract_strided_slice %1 {offsets = [0, 0], sizes = [8, 4], strides = [1, 1]} : vector<8x16xf32> to vector<8x4xf32>
    %5 = vector.extract_strided_slice %0 {offsets = [0, 0], sizes = [8, 1], strides = [1, 1]} : vector<8x8xf32> to vector<8x1xf32>
    %6 = vector.broadcast %5 : vector<8x1xf32> to vector<8x4xf32>
    %7 = arith.mulf %6, %4 : vector<8x4xf32>
    %8 = arith.addf %2, %7 : vector<8x4xf32>
    %9 = vector.extract_strided_slice %0 {offsets = [0, 4], sizes = [8, 1], strides = [1, 1]} : vector<8x8xf32> to vector<8x1xf32>
    %10 = vector.broadcast %9 : vector<8x1xf32> to vector<8x4xf32>
    %11 = arith.mulf %10, %4 : vector<8x4xf32>
    %12 = arith.addf %3, %11 : vector<8x4xf32>
    %13 = vector.extract_strided_slice %1 {offsets = [0, 4], sizes = [8, 4], strides = [1, 1]} : vector<8x16xf32> to vector<8x4xf32>
    %14 = vector.extract_strided_slice %0 {offsets = [0, 1], sizes = [8, 1], strides = [1, 1]} : vector<8x8xf32> to vector<8x1xf32>
    %15 = vector.broadcast %14 : vector<8x1xf32> to vector<8x4xf32>
    %16 = arith.mulf %15, %13 : vector<8x4xf32>
    %17 = arith.addf %8, %16 : vector<8x4xf32>
    %18 = vector.extract_strided_slice %0 {offsets = [0, 5], sizes = [8, 1], strides = [1, 1]} : vector<8x8xf32> to vector<8x1xf32>
    %19 = vector.broadcast %18 : vector<8x1xf32> to vector<8x4xf32>
    %20 = arith.mulf %19, %13 : vector<8x4xf32>
    %21 = arith.addf %12, %20 : vector<8x4xf32>
    %22 = vector.extract_strided_slice %1 {offsets = [0, 8], sizes = [8, 4], strides = [1, 1]} : vector<8x16xf32> to vector<8x4xf32>
    %23 = vector.extract_strided_slice %0 {offsets = [0, 2], sizes = [8, 1], strides = [1, 1]} : vector<8x8xf32> to vector<8x1xf32>
    %24 = vector.broadcast %23 : vector<8x1xf32> to vector<8x4xf32>
    %25 = arith.mulf %24, %22 : vector<8x4xf32>
    %26 = arith.addf %17, %25 : vector<8x4xf32>
    %27 = vector.extract_strided_slice %0 {offsets = [0, 6], sizes = [8, 1], strides = [1, 1]} : vector<8x8xf32> to vector<8x1xf32>
    %28 = vector.broadcast %27 : vector<8x1xf32> to vector<8x4xf32>
    %29 = arith.mulf %28, %22 : vector<8x4xf32>
    %30 = arith.addf %21, %29 : vector<8x4xf32>
    %31 = vector.extract_strided_slice %1 {offsets = [0, 12], sizes = [8, 4], strides = [1, 1]} : vector<8x16xf32> to vector<8x4xf32>
    %32 = vector.extract_strided_slice %0 {offsets = [0, 3], sizes = [8, 1], strides = [1, 1]} : vector<8x8xf32> to vector<8x1xf32>
    %33 = vector.broadcast %32 : vector<8x1xf32> to vector<8x4xf32>
    %34 = arith.mulf %33, %31 : vector<8x4xf32>
    %35 = arith.addf %26, %34 : vector<8x4xf32>
    %36 = vector.extract_strided_slice %0 {offsets = [0, 7], sizes = [8, 1], strides = [1, 1]} : vector<8x8xf32> to vector<8x1xf32>
    %37 = vector.broadcast %36 : vector<8x1xf32> to vector<8x4xf32>
    %38 = arith.mulf %37, %31 : vector<8x4xf32>
    %39 = arith.addf %30, %38 : vector<8x4xf32>
    %c0_4 = arith.constant 0 : index
    %c0_5 = arith.constant 0 : index
    %40 = vector.load %arg3[%c0_4, %c0_5] : memref<8x8xf32, #tpu.memory_space<vmem>>, vector<8x4xf32>
    tpu.vector_store %arg3[%c0_4, %c0_5], %35 {strides = array<i32>} : memref<8x8xf32, #tpu.memory_space<vmem>>, vector<8x4xf32>,
    %c0_6 = arith.constant 0 : index
    %c4 = arith.constant 4 : index
    %41 = vector.load %arg3[%c0_6, %c4] : memref<8x8xf32, #tpu.memory_space<vmem>>, vector<8x4xf32>
    tpu.vector_store %arg3[%c0_6, %c4], %39 {strides = array<i32>} : memref<8x8xf32, #tpu.memory_space<vmem>>, vector<8x4xf32>,
    return
  }
  func.func @transform_0(%arg0: i32) -> (i32, i32) {
    %c0_i32 = arith.constant 0 : i32
    %c0_i32_0 = arith.constant 0 : i32
    return %arg0, %c0_i32 : i32, i32
  }
  func.func @transform_1(%arg0: i32) -> (i32, i32) {
    %c0_i32 = arith.constant 0 : i32
    %c0_i32_0 = arith.constant 0 : i32
    return %arg0, %c0_i32 : i32, i32
  }
  func.func @transform_2(%arg0: i32) -> (i32, i32) {
    %c0_i32 = arith.constant 0 : i32
    %c0_i32_0 = arith.constant 0 : i32
    return %arg0, %c0_i32 : i32, i32
  }
}

</mosaic_0001>

<llo_original>
// kernel: tpu_custom_call.1
$region0: #{tpu_custom_call.1}
  #allocation0 [shape = 'u32[]', space=smem, size = 0x4, offset = 0x4, fixed_abs, tag = 'smem constant byte address 0x4 - core index']
  #allocation1 [shape = 'u32[144,128]{1,0:T(1,128)}', space=vmem, size = 0x12000, scoped, tag = 'internal scratch']
  %s0 = inlined_call_operand.vmem [shape: f32[16,8], index: 0, kind: input, shape index: {}]
  %s1 = inlined_call_operand.vmem [shape: f32[16,16], index: 1, kind: input, shape index: {}]
  %s2 = inlined_call_operand.vmem [shape: f32[16,8], index: 2, kind: output, shape index: {}]
  %s3 = sld [smem:[#allocation0]]
  $region41: #{tpu_custom_call.1} parent=0
    _
  %s5 = ssub.s32 1, %s3
  %s6 = scalar_select 0, %s5, %s3
  loop: start=0, step=1, limit=4
  $region2: #{tpu_custom_call.1} parent=0 // loop_pre_header
    _
  $region3: #{tpu_custom_call.1} parent=0 // loop_header
    %s8 = sphi 0, %s12
    %p9 = scmp.ge.s32.totalorder %s8, 4
    %s18 = sphi 0, %s20
    %s21 = sphi 0, %s18
    %s22 = sphi 0, %s21
    %s38 = sphi 0, %s22
    %s44 = sphi 0, %s46
    %s47 = sphi 0, %s44
    %s48 = sphi 0, %s47
    %s64 = sphi 0, %s48
    %s70 = sphi 0, %s72
    %s73 = sphi 0, %s70
    %s74 = sphi 0, %s73
    %s90 = sphi 0, %s74
  $region4: #{tpu_custom_call.1} parent=0 // loop_header_branch
    %11 = sbr.rel (%p9) target = $region8
  $region5: #{tpu_custom_call.1} parent=0 // loop_body
    %s13 = ssub.s32 %s8, 1
    %s14 = ssub.s32 %s8, 2
    %s15 = sadd.s32 %s8, 1
    %s16 = ssub.s32 %s8, %s15
    %p17 = scmp.eq.s32.totalorder %s16, 0
    %s19 = sadd.s32 %s18, 1
    %s20 = scalar_select %p17, %s18, %s19
    %p23 = pneg %p17
    %p24 = scmp.eq.s32.totalorder %s8, 1
    %p25 = por %p23, %p24
    %p26 = scmp.ne.s32.totalorder %s18, %s21
    %p27 = scmp.eq.s32.totalorder %s8, 0
    %p28 = por %p26, %p27
    %p29 = scmp.ne.s32.totalorder %s18, %s21
    %p30 = scmp.eq.s32.totalorder %s13, 1
    %p31 = por %p29, %p30
    %p32 = scmp.ne.s32.totalorder %s21, %s22
    %p33 = scmp.eq.s32.totalorder %s13, 0
    %p34 = por %p32, %p33
    %p35 = scmp.ne.s32.totalorder %s21, %s22
    %p36 = scmp.eq.s32.totalorder %s14, 1
    %p37 = por %p35, %p36
    %p39 = scmp.ne.s32.totalorder %s22, %s38
    %p40 = scmp.eq.s32.totalorder %s14, 0
    %p41 = por %p39, %p40
    %s42 = ssub.s32 %s8, %s15
    %p43 = scmp.eq.s32.totalorder %s42, 0
    %s45 = sadd.s32 %s44, 1
    %s46 = scalar_select %p43, %s44, %s45
    %p49 = pneg %p43
    %p50 = scmp.eq.s32.totalorder %s8, 1
    %p51 = por %p49, %p50
    %p52 = scmp.ne.s32.totalorder %s44, %s47
    %p53 = scmp.eq.s32.totalorder %s8, 0
    %p54 = por %p52, %p53
    %p55 = scmp.ne.s32.totalorder %s44, %s47
    %p56 = scmp.eq.s32.totalorder %s13, 1
    %p57 = por %p55, %p56
    %p58 = scmp.ne.s32.totalorder %s47, %s48
    %p59 = scmp.eq.s32.totalorder %s13, 0
    %p60 = por %p58, %p59
    %p61 = scmp.ne.s32.totalorder %s47, %s48
    %p62 = scmp.eq.s32.totalorder %s14, 1
    %p63 = por %p61, %p62
    %p65 = scmp.ne.s32.totalorder %s48, %s64
    %p66 = scmp.eq.s32.totalorder %s14, 0
    %p67 = por %p65, %p66
    %s68 = ssub.s32 %s8, %s15
    %p69 = scmp.eq.s32.totalorder %s68, 0
    %s71 = sadd.s32 %s70, 1
    %s72 = scalar_select %p69, %s70, %s71
    %p75 = pneg %p69
    %p76 = scmp.eq.s32.totalorder %s8, 1
    %p77 = por %p75, %p76
    %p78 = scmp.ne.s32.totalorder %s70, %s73
    %p79 = scmp.eq.s32.totalorder %s8, 0
    %p80 = por %p78, %p79
    %p81 = scmp.ne.s32.totalorder %s70, %s73
    %p82 = scmp.eq.s32.totalorder %s13, 1
    %p83 = por %p81, %p82
    %p84 = scmp.ne.s32.totalorder %s73, %s74
    %p85 = scmp.eq.s32.totalorder %s13, 0
    %p86 = por %p84, %p85
    %p87 = scmp.ne.s32.totalorder %s73, %s74
    %p88 = scmp.eq.s32.totalorder %s14, 1
    %p89 = por %p87, %p88
    %p91 = scmp.ne.s32.totalorder %s74, %s90
    %p92 = scmp.eq.s32.totalorder %s14, 0
    %p93 = por %p91, %p92
    %p94 = scmp.le.s32.totalorder 1, %s8
    %p95 = scmp.lt.s32.totalorder %s8, 3
    %p96 = pnand %p94, %p95
    %p97 = pneg %p96
    // Predicated region
    $region9: #{tpu_custom_call.1} parent=5 // pred_check
      _
    $region10: #{tpu_custom_call.1} parent=5 // pred_check_branch
      %99 = sbr.rel (%p96) target = $region12
    $region11: #{tpu_custom_call.1} parent=5 // pred_region
      %s100 = ssub.s32 %s8, 1
    $region12: #{tpu_custom_call.1} parent=5 // pred_fallthru
      _
    %p101 = scmp.lt.s32.totalorder %s8, 2
    // Predicated region
    $region13: #{tpu_custom_call.1} parent=5 // pred_check
      %p102 = pneg %p101
    $region14: #{tpu_custom_call.1} parent=5 // pred_check_branch
      %104 = sbr.rel (%p102) target = $region16
    $region15: #{tpu_custom_call.1} parent=5 // pred_region
      // Predicated region
      $region17: #{tpu_custom_call.1} parent=15 // pred_check
        %p105 = pneg %p28
      $region18: #{tpu_custom_call.1} parent=15 // pred_check_branch
        %107 = sbr.rel (%p105) target = $region20
      $region19: #{tpu_custom_call.1} parent=15 // pred_region
        %p108 = scmp.lt.s32.totalorder %s8, 1
        %s109 = scalar_select %p108, %s8, 1
        %s110 = smul.addr %s109, 8
        %s111 = scalar_lea.vmem %s0, %s110
      $region20: #{tpu_custom_call.1} parent=15 // pred_fallthru
        _
      // Predicated region
      $region21: #{tpu_custom_call.1} parent=15 // pred_check
        %p112 = pneg %p54
      $region22: #{tpu_custom_call.1} parent=15 // pred_check_branch
        %114 = sbr.rel (%p112) target = $region24
      $region23: #{tpu_custom_call.1} parent=15 // pred_region
        %p115 = scmp.lt.s32.totalorder %s8, 1
        %s116 = scalar_select %p115, %s8, 1
        %s117 = smul.addr %s116, 8
        %s118 = scalar_lea.vmem %s1, %s117
      $region24: #{tpu_custom_call.1} parent=15 // pred_fallthru
        _
    $region16: #{tpu_custom_call.1} parent=5 // pred_fallthru
      _
    %p119 = scmp.le.s32.totalorder 1, %s8
    %p120 = scmp.lt.s32.totalorder %s8, 3
    %p121 = pnand %p119, %p120
    %p122 = pneg %p121
    // Predicated region
    $region25: #{tpu_custom_call.1} parent=5 // pred_check
      _
    $region26: #{tpu_custom_call.1} parent=5 // pred_check_branch
      %124 = sbr.rel (%p121) target = $region28
    $region27: #{tpu_custom_call.1} parent=5 // pred_region
      %s125 = ssub.s32 %s8, 1
      %p126 = scmp.lt.s32.totalorder %s13, 1
      %s127 = scalar_select %p126, %s13, 1
      %s128 = smul.addr %s127, 8
      %s129 = scalar_lea.vmem %s0, %s128
      %p130 = pneg %p34
      %p131 = pneg %p31
      %p132 = scmp.lt.s32.totalorder %s13, 1
      %s133 = scalar_select %p132, %s13, 1
      %s134 = smul.addr %s133, 8
      %s135 = scalar_lea.vmem %s1, %s134
      %p136 = pneg %p60
      %p137 = pneg %p57
      %p138 = pneg %p86
      %p139 = pneg %p83
      %p140 = scmp.lt.s32.totalorder %s13, 1
      %s141 = scalar_select %p140, %s13, 1
      %s142 = smul.addr %s141, 8
      %s143 = scalar_lea.vmem %s2, %s142
      %p144 = scmp.lt.s32.totalorder %s13, 1
      %s145 = scalar_select %p144, %s13, 1
      %s146 = smul.addr %s145, 8
      %s147 = scalar_lea.vmem %s0, %s146
      %p148 = scmp.lt.s32.totalorder %s13, 1
      %s149 = scalar_select %p148, %s13, 1
      %s150 = smul.addr %s149, 8
      %s151 = scalar_lea.vmem %s1, %s150
      %p152 = scmp.lt.s32.totalorder %s13, 1
      %s153 = scalar_select %p152, %s13, 1
      %s154 = smul.addr %s153, 8
      %s155 = scalar_lea.vmem %s2, %s154
      %v156 = vld [vmem:[%s147] sm:$0xff]
      %v157 = vld [vmem:[%s151] sm:$0xff]
      %159 = vset.pattern.permute.xlu0 0
      %160 = vperm.xlu0 %159, %v156
      %v161 = vpop.permute.xlu0 %160
      %v163 = vmul.f32 %v161, %v157
      %v164 = vadd.f32 %v163, 0.0
      %165 = vset.pattern.permute.xlu0 4
      %166 = vperm.xlu0 %165, %v156
      %v167 = vpop.permute.xlu0 %166
      %v169 = vmul.f32 %v167, %v157
      %v170 = vadd.f32 %v169, 0.0
      %171 = vset.pattern.permute.xlu0 1
      %172 = vperm.xlu0 %171, %v156
      %v173 = vpop.permute.xlu0 %172
      %v175 = vmul.f32 %v173, %v157
      %177 = vrot.lane.b32.xlu0 %v175, 124
      %v178 = vpop.permute.xlu0 %177
      %v180 = vadd.f32 %v164, %v178
      %181 = vset.pattern.permute.xlu0 5
      %182 = vperm.xlu0 %181, %v156
      %v183 = vpop.permute.xlu0 %182
      %v185 = vmul.f32 %v183, %v157
      %187 = vrot.lane.b32.xlu0 %v185, 124
      %v188 = vpop.permute.xlu0 %187
      %v190 = vadd.f32 %v170, %v188
      %191 = vset.pattern.permute.xlu0 2
      %192 = vperm.xlu0 %191, %v156
      %v193 = vpop.permute.xlu0 %192
      %v195 = vmul.f32 %v193, %v157
      %197 = vrot.lane.b32.xlu0 %v195, 120
      %v198 = vpop.permute.xlu0 %197
      %v200 = vadd.f32 %v180, %v198
      %201 = vset.pattern.permute.xlu0 6
      %202 = vperm.xlu0 %201, %v156
      %v203 = vpop.permute.xlu0 %202
      %v205 = vmul.f32 %v203, %v157
      %207 = vrot.lane.b32.xlu0 %v205, 120
      %v208 = vpop.permute.xlu0 %207
      %v210 = vadd.f32 %v190, %v208
      %211 = vset.pattern.permute.xlu0 3
      %212 = vperm.xlu0 %211, %v156
      %v213 = vpop.permute.xlu0 %212
      %v215 = vmul.f32 %v213, %v157
      %217 = vrot.lane.b32.xlu0 %v215, 116
      %v218 = vpop.permute.xlu0 %217
      %v220 = vadd.f32 %v200, %v218
      %221 = vset.pattern.permute.xlu0 7
      %222 = vperm.xlu0 %221, %v156
      %v223 = vpop.permute.xlu0 %222
      %v225 = vmul.f32 %v223, %v157
      %227 = vrot.lane.b32.xlu0 %v225, 116
      %v228 = vpop.permute.xlu0 %227
      %v230 = vadd.f32 %v210, %v228
      %vm231 = vcmask 31744
      %232 = vst.msk [vmem:[%s155] sm:$0xff] %vm231, %v220
      %234 = vrot.lane.b32.xlu0 %v230, 4
      %v235 = vpop.permute.xlu0 %234
      %vm237 = vcmask 64544
      %238 = vst.msk [vmem:[%s155] sm:$0xff] %vm237, %v235
      %p239 = scmp.lt.s32.totalorder %s13, 1
      %s240 = scalar_select %p239, %s13, 1
      %s241 = smul.addr %s240, 8
      %s242 = scalar_lea.vmem %s2, %s241
      // Predicated region
      $region29: #{tpu_custom_call.1} parent=27 // pred_check
        %p243 = pneg %p83
      $region30: #{tpu_custom_call.1} parent=27 // pred_check_branch
        %245 = sbr.rel (%p243) target = $region32
      $region31: #{tpu_custom_call.1} parent=27 // pred_region
        _
      $region32: #{tpu_custom_call.1} parent=27 // pred_fallthru
        _
    $region28: #{tpu_custom_call.1} parent=5 // pred_fallthru
      _
    %p246 = scmp.le.s32.totalorder 2, %s8
    // Predicated region
    $region33: #{tpu_custom_call.1} parent=5 // pred_check
      %p247 = pneg %p246
    $region34: #{tpu_custom_call.1} parent=5 // pred_check_branch
      %249 = sbr.rel (%p247) target = $region36
    $region35: #{tpu_custom_call.1} parent=5 // pred_region
      %s250 = ssub.s32 %s8, 2
      // Predicated region
      $region37: #{tpu_custom_call.1} parent=35 // pred_check
        %p251 = pneg %p89
      $region38: #{tpu_custom_call.1} parent=35 // pred_check_branch
        %253 = sbr.rel (%p251) target = $region40
      $region39: #{tpu_custom_call.1} parent=35 // pred_region
        %p254 = scmp.lt.s32.totalorder %s14, 1
        %s255 = scalar_select %p254, %s14, 1
        %s256 = smul.addr %s255, 8
        %s257 = scalar_lea.vmem %s2, %s256
      $region40: #{tpu_custom_call.1} parent=35 // pred_fallthru
        _
    $region36: #{tpu_custom_call.1} parent=5 // pred_fallthru
      _
  $region6: #{tpu_custom_call.1} parent=0 // loop_footer
    %s12 = sadd.s32 1, %s8
  $region7: #{tpu_custom_call.1} parent=0 // loop_footer_branch
    %7 = sbr.rel target = $region3
  $region8: #{tpu_custom_call.1} parent=0 // loop_exit
    _

</llo_original>
